<compile_context>
chip_gen: v7x
topology: tpu7x:2x2x1
jax: 0.10.0
libtpu: 0.0.40
codegen_flags: <defaults>
</compile_context>

<pallas_src>
import functools

import jax
import jax.numpy as jnp
from jax import lax
from jax.experimental import pallas as pl
from jax.experimental.pallas import tpu as pltpu

_EPS = 1e-5


def _pick_row_tile(M, D, budget_bytes=8 * 1024 * 1024):
    """Rows per block so ~4 f32 (tm, D) buffers (in+out, double-buffered)
    stay within `budget_bytes` on every TPU generation."""
    max_rows = max(1, budget_bytes // (D * 4 * 4))
    if M <= max_rows:
        return M                      # whole row extent fits -> single block
    tm = (max_rows // 8) * 8          # keep sublane-aligned tiles
    return max(8, tm)


def _make_stats_kernel(tm, M):
    need_mask = (M % tm) != 0

    def kernel(x_ref, psum_ref, psumsq_ref):
        x = x_ref[...].astype(jnp.float32)              # (tm, D)
        if need_mask:
            # Last row tile may extend past M; zero the padded rows so they
            # do not contribute to the statistics.
            row0 = pl.program_id(0) * tm
            rows = row0 + lax.broadcasted_iota(jnp.int32, x.shape, 0)
            x = jnp.where(rows < M, x, 0.0)
        psum_ref[0] = jnp.sum(x, axis=0, keepdims=True)        # (1, D)
        psumsq_ref[0] = jnp.sum(x * x, axis=0, keepdims=True)  # (1, D)

    return kernel


def _norm_kernel(x_ref, scale_ref, shift_ref, o_ref):
    x = x_ref[...].astype(jnp.float32)                  # (tm, D)
    o_ref[...] = (x * scale_ref[...] + shift_ref[...]).astype(o_ref.dtype)


@functools.partial(jax.jit, static_argnames=("eps",))
def batchnorm_last_dim(x, gamma, beta, eps=_EPS):
    """x: (B, N, D); gamma, beta: (D,). Returns (B, N, D)."""
    B, N, D = x.shape
    M = B * N
    x2 = x.reshape(M, D)

    tm = _pick_row_tile(M, D)
    n_chunks = pl.cdiv(M, tm)

    # ---- Pass A: per-chunk partial sums / sums of squares -------------------
    psum, psumsq = pl.pallas_call(
        _make_stats_kernel(tm, M),
        out_shape=(
            jax.ShapeDtypeStruct((n_chunks, 1, D), jnp.float32),
            jax.ShapeDtypeStruct((n_chunks, 1, D), jnp.float32),
        ),
        grid_spec=pltpu.PrefetchScalarGridSpec(
            num_scalar_prefetch=0,
            grid=(n_chunks,),
            in_specs=[pl.BlockSpec((tm, D), lambda i: (i, 0))],
            out_specs=[
                pl.BlockSpec((1, 1, D), lambda i: (i, 0, 0)),
                pl.BlockSpec((1, 1, D), lambda i: (i, 0, 0)),
            ],
        ),
        compiler_params=pltpu.CompilerParams(
            dimension_semantics=("parallel",),
        ),
    )(x2)

    # ---- Tiny (1, D) combine + affine fold (plain JAX, negligible cost) -----
    total = jnp.sum(psum, axis=0)                        # (1, D)
    total_sq = jnp.sum(psumsq, axis=0)                   # (1, D)
    mean = total / M
    var = jnp.maximum(total_sq / M - mean * mean, 0.0)   # biased variance
    inv_std = 1.0 / jnp.sqrt(var + eps)
    g = gamma.reshape(1, D).astype(jnp.float32)
    b = beta.reshape(1, D).astype(jnp.float32)
    scale = g * inv_std                                  # (1, D)
    shift = b - mean * scale                             # (1, D)

    # ---- Pass B: streaming normalize  out = x * scale + shift ---------------
    out = pl.pallas_call(
        _norm_kernel,
        out_shape=jax.ShapeDtypeStruct((M, D), x.dtype),
        grid_spec=pltpu.PrefetchScalarGridSpec(
            num_scalar_prefetch=0,
            grid=(n_chunks,),
            in_specs=[
                pl.BlockSpec((tm, D), lambda i: (i, 0)),
                pl.BlockSpec((1, D), lambda i: (0, 0)),
                pl.BlockSpec((1, D), lambda i: (0, 0)),
            ],
            out_specs=pl.BlockSpec((tm, D), lambda i: (i, 0)),
        ),
        compiler_params=pltpu.CompilerParams(
            dimension_semantics=("parallel",),
        ),
    )(x2, scale, shift)

    return out.reshape(B, N, D)


def _reference(x, gamma, beta):
    # Pure-JAX reference of training-mode BatchNorm1d applied on the last dim.
    mean = jnp.mean(x, axis=(0, 1), keepdims=True)
    var = jnp.mean((x - mean) ** 2, axis=(0, 1), keepdims=True)
    return (x - mean) / jnp.sqrt(var + _EPS) * gamma + beta


if __name__ == "__main__":
    key = jax.random.PRNGKey(0)
    B, N, D = 2, 8, 32
    x = jax.random.normal(key, (B, N, D), dtype=jnp.float32)

    # Deterministic parameter init matching nn.BatchNorm1d defaults.
    gamma = jnp.ones((D,), dtype=jnp.float32)
    beta = jnp.zeros((D,), dtype=jnp.float32)

    y = batchnorm_last_dim(x, gamma, beta)
    y = jax.block_until_ready(y)

    y_ref = _reference(x, gamma, beta)
    assert y.shape == (B, N, D)
    assert jnp.allclose(y, y_ref, atol=2e-5, rtol=1e-5)

    # TODO(synk): running_mean/running_var updates (momentum buffers) are
    # stateful bookkeeping outside the forward math and are not implemented.
    print("KERNEL_OK")
</pallas_src>

<mosaic_0001>
module attributes {stable_mosaic.version = 11 : i64} {
  func.func @_norm_kernel(%arg0: i32, %arg1: memref<16x32xf32, #tpu.memory_space<vmem>>, %arg2: memref<1x32xf32, #tpu.memory_space<vmem>>, %arg3: memref<1x32xf32, #tpu.memory_space<vmem>>, %arg4: memref<16x32xf32, #tpu.memory_space<vmem>>) attributes {dimension_semantics = [#tpu.dimension_semantics<parallel>], iteration_bounds = array<i64: 1>, scalar_prefetch = 0 : i64, scratch_operands = 0 : i64, tpu.core_type = #tpu.core_type<tc>, window_params = [{transform_indices = @transform_0, window_bounds = array<i64: 16, 32>}, {pipeline_mode = #tpu.pipeline_mode<synchronous>, transform_indices = @transform_1, window_bounds = array<i64: 1, 32>}, {pipeline_mode = #tpu.pipeline_mode<synchronous>, transform_indices = @transform_2, window_bounds = array<i64: 1, 32>}, {transform_indices = @transform_3, window_bounds = array<i64: 16, 32>}]} {
    %c0 = arith.constant 0 : index
    %c0_0 = arith.constant 0 : index
    %0 = vector.load %arg1[%c0, %c0_0] : memref<16x32xf32, #tpu.memory_space<vmem>>, vector<16x32xf32>
    %c0_1 = arith.constant 0 : index
    %c0_2 = arith.constant 0 : index
    %1 = vector.load %arg2[%c0_1, %c0_2] : memref<1x32xf32, #tpu.memory_space<vmem>>, vector<1x32xf32>
    %2 = vector.broadcast %1 : vector<1x32xf32> to vector<16x32xf32>
    %3 = arith.mulf %0, %2 : vector<16x32xf32>
    %c0_3 = arith.constant 0 : index
    %c0_4 = arith.constant 0 : index
    %4 = vector.load %arg3[%c0_3, %c0_4] : memref<1x32xf32, #tpu.memory_space<vmem>>, vector<1x32xf32>
    %5 = vector.broadcast %4 : vector<1x32xf32> to vector<16x32xf32>
    %6 = arith.addf %3, %5 : vector<16x32xf32>
    %c0_5 = arith.constant 0 : index
    %c0_6 = arith.constant 0 : index
    %7 = vector.load %arg4[%c0_5, %c0_6] : memref<16x32xf32, #tpu.memory_space<vmem>>, vector<16x32xf32>
    tpu.vector_store %arg4[%c0_5, %c0_6], %6 {strides = array<i32>} : memref<16x32xf32, #tpu.memory_space<vmem>>, vector<16x32xf32>,
    return
  }
  func.func @transform_0(%arg0: i32) -> (i32, i32) {
    %c0_i32 = arith.constant 0 : i32
    %c0_i32_0 = arith.constant 0 : i32
    return %arg0, %c0_i32 : i32, i32
  }
  func.func @transform_1(%arg0: i32) -> (i32, i32) {
    %c0_i32 = arith.constant 0 : i32
    %c0_i32_0 = arith.constant 0 : i32
    %c0_i32_1 = arith.constant 0 : i32
    return %c0_i32, %c0_i32_0 : i32, i32
  }
  func.func @transform_2(%arg0: i32) -> (i32, i32) {
    %c0_i32 = arith.constant 0 : i32
    %c0_i32_0 = arith.constant 0 : i32
    %c0_i32_1 = arith.constant 0 : i32
    return %c0_i32, %c0_i32_0 : i32, i32
  }
  func.func @transform_3(%arg0: i32) -> (i32, i32) {
    %c0_i32 = arith.constant 0 : i32
    %c0_i32_0 = arith.constant 0 : i32
    return %arg0, %c0_i32 : i32, i32
  }
}

module attributes {stable_mosaic.version = 11 : i64} {
  func.func @kernel(%arg0: i32, %arg1: memref<16x32xf32, #tpu.memory_space<vmem>>, %arg2: memref<1x1x32xf32, #tpu.memory_space<vmem>>, %arg3: memref<1x1x32xf32, #tpu.memory_space<vmem>>) attributes {dimension_semantics = [#tpu.dimension_semantics<parallel>], iteration_bounds = array<i64: 1>, scalar_prefetch = 0 : i64, scratch_operands = 0 : i64, tpu.core_type = #tpu.core_type<tc>, window_params = [{transform_indices = @transform_0, window_bounds = array<i64: 16, 32>}, {transform_indices = @transform_1, window_bounds = array<i64: 1, 1, 32>}, {transform_indices = @transform_2, window_bounds = array<i64: 1, 1, 32>}]} {
    %c0 = arith.constant 0 : index
    %c0_0 = arith.constant 0 : index
    %0 = vector.load %arg1[%c0, %c0_0] : memref<16x32xf32, #tpu.memory_space<vmem>>, vector<16x32xf32>
    %cst = arith.constant dense<0.000000e+00> : vector<32xf32>
    %1 = vector.multi_reduction <add>, %0, %cst [0] : vector<16x32xf32> to vector<32xf32>
    %2 = vector.shape_cast %1 : vector<32xf32> to vector<1x32xf32>
    %c0_1 = arith.constant 0 : index
    %c0_2 = arith.constant 0 : index
    %c0_3 = arith.constant 0 : index
    %3 = vector.load %arg2[%c0_1, %c0_2, %c0_3] : memref<1x1x32xf32, #tpu.memory_space<vmem>>, vector<1x1x32xf32>
    %4 = vector.shape_cast %3 : vector<1x1x32xf32> to vector<1x32xf32>
    %5 = vector.shape_cast %2 : vector<1x32xf32> to vector<1x1x32xf32>
    tpu.vector_store %arg2[%c0_1, %c0_2, %c0_3], %5 {strides = array<i32>} : memref<1x1x32xf32, #tpu.memory_space<vmem>>, vector<1x1x32xf32>,
    %6 = arith.mulf %0, %0 : vector<16x32xf32>
    %cst_4 = arith.constant dense<0.000000e+00> : vector<32xf32>
    %7 = vector.multi_reduction <add>, %6, %cst_4 [0] : vector<16x32xf32> to vector<32xf32>
    %8 = vector.shape_cast %7 : vector<32xf32> to vector<1x32xf32>
    %c0_5 = arith.constant 0 : index
    %c0_6 = arith.constant 0 : index
    %c0_7 = arith.constant 0 : index
    %9 = vector.load %arg3[%c0_5, %c0_6, %c0_7] : memref<1x1x32xf32, #tpu.memory_space<vmem>>, vector<1x1x32xf32>
    %10 = vector.shape_cast %9 : vector<1x1x32xf32> to vector<1x32xf32>
    %11 = vector.shape_cast %8 : vector<1x32xf32> to vector<1x1x32xf32>
    tpu.vector_store %arg3[%c0_5, %c0_6, %c0_7], %11 {strides = array<i32>} : memref<1x1x32xf32, #tpu.memory_space<vmem>>, vector<1x1x32xf32>,
    return
  }
  func.func @transform_0(%arg0: i32) -> (i32, i32) {
    %c0_i32 = arith.constant 0 : i32
    %c0_i32_0 = arith.constant 0 : i32
    return %arg0, %c0_i32 : i32, i32
  }
  func.func @transform_1(%arg0: i32) -> (i32, i32, i32) {
    %c0_i32 = arith.constant 0 : i32
    %c0_i32_0 = arith.constant 0 : i32
    %c0_i32_1 = arith.constant 0 : i32
    return %arg0, %c0_i32, %c0_i32_0 : i32, i32, i32
  }
  func.func @transform_2(%arg0: i32) -> (i32, i32, i32) {
    %c0_i32 = arith.constant 0 : i32
    %c0_i32_0 = arith.constant 0 : i32
    %c0_i32_1 = arith.constant 0 : i32
    return %arg0, %c0_i32, %c0_i32_0 : i32, i32, i32
  }
}

</mosaic_0001>

<llo_original>
// kernel: batchnorm_last_dim.3
$region0: #{batchnorm_last_dim.3}
  #allocation0 [shape = 'u32[]', space=smem, size = 0x4, offset = 0x4, fixed_abs, tag = 'smem constant byte address 0x4 - core index']
  #allocation1 [shape = 'u32[144,128]{1,0:T(1,128)}', space=vmem, size = 0x12000, scoped, tag = 'internal scratch']
  %s0 = inlined_call_operand.vmem [shape: f32[16,32], index: 0, kind: input, shape index: {}]
  %s1 = inlined_call_operand.vmem [shape: f32[1,32], index: 1, kind: input, shape index: {}]
  %s2 = inlined_call_operand.vmem [shape: f32[1,32], index: 2, kind: input, shape index: {}]
  %s3 = inlined_call_operand.hbm [shape: f32[16,32], index: 3, kind: output, shape index: {}]
  %s4 = sld [smem:[#allocation0]]
  $region22: #{batchnorm_last_dim.3} parent=0
    _
  %s6 = ssub.s32 1, %s4
  %s7 = scalar_select 0, %s6, %s4
  $region1: #{batchnorm_last_dim.3} parent=0
    #allocation2 [shape = 'u8[8192]{0}', space=vmem, size = 0x2000, scoped, tag = 'output window, operand 0, single buffered']
    #allocation3 [shape = 's32[1]{0}', space=sflag, size = 0x4, scoped, tag = 'scoped memory for batchnorm_last_dim.3']
    %8 = vsyncpa [#allocation3], 0
    // Predicated region
    $region2: #{batchnorm_last_dim.3} parent=1 // pred_check
      _
    $region3: #{batchnorm_last_dim.3} parent=1 // pred_check_branch
      %10 = sbr.rel (0) target = $region5
    $region4: #{batchnorm_last_dim.3} parent=1 // pred_region
      _
    $region5: #{batchnorm_last_dim.3} parent=1 // pred_fallthru
      _
    // Predicated region
    $region6: #{batchnorm_last_dim.3} parent=1 // pred_check
      _
    $region7: #{batchnorm_last_dim.3} parent=1 // pred_check_branch
      %12 = sbr.rel (0) target = $region9
    $region8: #{batchnorm_last_dim.3} parent=1 // pred_region
      _
    $region9: #{batchnorm_last_dim.3} parent=1 // pred_fallthru
      _
    // Predicated region
    $region10: #{batchnorm_last_dim.3} parent=1 // pred_check
      _
    $region11: #{batchnorm_last_dim.3} parent=1 // pred_check_branch
      %14 = sbr.rel (0) target = $region13
    $region12: #{batchnorm_last_dim.3} parent=1 // pred_region
      _
    $region13: #{batchnorm_last_dim.3} parent=1 // pred_fallthru
      _
    %v15 = vld [vmem:[%s0] sm:$0xff]
    %v16 = vld [vmem:[%s0 + $0x8] sm:$0xff]
    %v17 = vld [vmem:[%s1] sm:$0x1]
    %v19 = vlaneseq
    %v20 = vshrl.u32 %v19, 7
    %v21 = vsub.s32 0, %v20
    %v22 = vrot.slane %v17, %v21
    %v24 = vmul.f32 %v15, %v22
    %v25 = vmul.f32 %v16, %v22
    %v26 = vld [vmem:[%s2] sm:$0x1]
    %v28 = vlaneseq
    %v29 = vshrl.u32 %v28, 7
    %v30 = vsub.s32 0, %v29
    %v31 = vrot.slane %v26, %v30
    %v33 = vadd.f32 %v24, %v31
    %v34 = vadd.f32 %v25, %v31
    %vm35 = vcmask 261120
    %36 = vst.msk [vmem:[#allocation2] sm:$0xff] %vm35, %v33
    %37 = vst.msk [vmem:[#allocation2 + $0x8] sm:$0xff] %vm35, %v34
    // Predicated region
    $region14: #{batchnorm_last_dim.3} parent=1 // pred_check
      _
    $region15: #{batchnorm_last_dim.3} parent=1 // pred_check_branch
      %39 = sbr.rel (0) target = $region17
    $region16: #{batchnorm_last_dim.3} parent=1 // pred_region
      %s41 = ssub.s32 256, 256
      %42 = vsyncadd [#allocation3], %s41
      %s43 = sshll.u32 [#allocation2], 4
      %s44 = int_to_ptr.vmem [resolvable:$true] %s43
      %49 = dma.vmem_to_hbm [thread:$0]  %s44, 256, %s3, [#allocation3], 128, 128, 8
    $region17: #{batchnorm_last_dim.3} parent=1 // pred_fallthru
      _
    // Predicated region
    $region18: #{batchnorm_last_dim.3} parent=1 // pred_check
      _
    $region19: #{batchnorm_last_dim.3} parent=1 // pred_check_branch
      %51 = sbr.rel (0) target = $region21
    $region20: #{batchnorm_last_dim.3} parent=1 // pred_region
      %52 = dma.done [#allocation3], 256
    $region21: #{batchnorm_last_dim.3} parent=1 // pred_fallthru
      _
    %53 = vsyncpa [#allocation3], 1

// kernel: batchnorm_last_dim.2
$region0: #{batchnorm_last_dim.2}
  #allocation0 [shape = 'u32[]', space=smem, size = 0x4, offset = 0x4, fixed_abs, tag = 'smem constant byte address 0x4 - core index']
  #allocation1 [shape = 'u32[144,128]{1,0:T(1,128)}', space=vmem, size = 0x12000, scoped, tag = 'internal scratch']
  %s0 = inlined_call_operand.hbm [shape: f32[16,32], index: 0, kind: input, shape index: {}]
  %s1 = inlined_call_operand.vmem [shape: f32[1,1,32], index: 1, kind: output, shape index: {0}]
  %s2 = inlined_call_operand.vmem [shape: f32[1,1,32], index: 2, kind: output, shape index: {1}]
  %3 = xla_tuple %s1, %s2
  %s4 = sld [smem:[#allocation0]]
  $region26: #{batchnorm_last_dim.2} parent=0
    _
  %s6 = ssub.s32 1, %s4
  %s7 = scalar_select 0, %s6, %s4
  $region1: #{batchnorm_last_dim.2} parent=0
    #allocation2 [shape = 'u8[8192]{0}', space=vmem, size = 0x2000, scoped, tag = 'input window, operand 0, single buffered']
    #allocation3 [shape = 's32[1]{0}', space=sflag, size = 0x4, scoped, tag = 'scoped memory for batchnorm_last_dim.2']
    %8 = vsyncpa [#allocation3], 0
    // Predicated region
    $region2: #{batchnorm_last_dim.2} parent=1 // pred_check
      _
    $region3: #{batchnorm_last_dim.2} parent=1 // pred_check_branch
      %10 = sbr.rel (0) target = $region5
    $region4: #{batchnorm_last_dim.2} parent=1 // pred_region
      %s12 = ssub.s32 256, 256
      %13 = vsyncadd [#allocation3], %s12
      %s14 = sshll.u32 [#allocation2], 4
      %s15 = int_to_ptr.vmem [resolvable:$true] %s14
      %20 = dma.hbm_to_vmem [thread:$0]  %s0, 256, %s15, [#allocation3], 128, 128, 8
    $region5: #{batchnorm_last_dim.2} parent=1 // pred_fallthru
      _
    // Predicated region
    $region6: #{batchnorm_last_dim.2} parent=1 // pred_check
      _
    $region7: #{batchnorm_last_dim.2} parent=1 // pred_check_branch
      %22 = sbr.rel (0) target = $region9
    $region8: #{batchnorm_last_dim.2} parent=1 // pred_region
      %23 = dma.done [#allocation3], 256
    $region9: #{batchnorm_last_dim.2} parent=1 // pred_fallthru
      _
    %v24 = vld [vmem:[#allocation2] sm:$0xff]
    %v25 = vld [vmem:[#allocation2 + $0x8] sm:$0xff]
    %vm26 = vcmask 261120
    %v27 = vsel %vm26, %v24, 0.0
    %v28 = vsel %vm26, %v25, 0.0
    %v29 = vadd.f32 %v27, %v28
    %v30 = vrot.slane %v29, 4
    %v31 = vadd.f32 %v29, %v30
    %v32 = vrot.slane %v31, 2
    %v33 = vadd.f32 %v31, %v32
    %v34 = vrot.slane %v33, 1
    %v35 = vadd.f32 %v33, %v34
    %vm36 = vcmask 253952
    %37 = vst.msk [vmem:[%s1] sm:$0x1] %vm36, %v35
    %v38 = vmul.f32 %v24, %v24
    %v39 = vmul.f32 %v25, %v25
    %v40 = vsel %vm26, %v38, 0.0
    %v41 = vsel %vm26, %v39, 0.0
    %v42 = vadd.f32 %v40, %v41
    %v43 = vrot.slane %v42, 4
    %v44 = vadd.f32 %v42, %v43
    %v45 = vrot.slane %v44, 2
    %v46 = vadd.f32 %v44, %v45
    %v47 = vrot.slane %v46, 1
    %v48 = vadd.f32 %v46, %v47
    %49 = vst.msk [vmem:[%s2] sm:$0x1] %vm36, %v48
    // Predicated region
    $region10: #{batchnorm_last_dim.2} parent=1 // pred_check
      _
    $region11: #{batchnorm_last_dim.2} parent=1 // pred_check_branch
      %51 = sbr.rel (0) target = $region13
    $region12: #{batchnorm_last_dim.2} parent=1 // pred_region
      _
    $region13: #{batchnorm_last_dim.2} parent=1 // pred_fallthru
      _
    // Predicated region
    $region14: #{batchnorm_last_dim.2} parent=1 // pred_check
      _
    $region15: #{batchnorm_last_dim.2} parent=1 // pred_check_branch
      %53 = sbr.rel (0) target = $region17
    $region16: #{batchnorm_last_dim.2} parent=1 // pred_region
      _
    $region17: #{batchnorm_last_dim.2} parent=1 // pred_fallthru
      _
    // Predicated region
    $region18: #{batchnorm_last_dim.2} parent=1 // pred_check
      _
    $region19: #{batchnorm_last_dim.2} parent=1 // pred_check_branch
      %55 = sbr.rel (0) target = $region21
    $region20: #{batchnorm_last_dim.2} parent=1 // pred_region
      _
    $region21: #{batchnorm_last_dim.2} parent=1 // pred_fallthru
      _
    // Predicated region
    $region22: #{batchnorm_last_dim.2} parent=1 // pred_check
      _
    $region23: #{batchnorm_last_dim.2} parent=1 // pred_check_branch
      %57 = sbr.rel (0) target = $region25
    $region24: #{batchnorm_last_dim.2} parent=1 // pred_region
      _
    $region25: #{batchnorm_last_dim.2} parent=1 // pred_fallthru
      _
    %58 = vsyncpa [#allocation3], 1

</llo_original>
